<compile_context>
chip_gen: v7x
topology: tpu7x:2x2x1
jax: 0.10.0
libtpu: 0.0.40
codegen_flags: <defaults>
</compile_context>

<pallas_src>
import functools

import jax
import jax.numpy as jnp
from jax.experimental import pallas as pl
from jax.experimental.pallas import tpu as pltpu


def _round_up(x, m):
    return (x + m - 1) // m * m


def _lane_iou_sums(pred, target, *, lane_width, img_h, img_w, max_dx):
    """Per-lane overlap/union sums for one (Nr, TL) f32 block.

    Rows (Nr) sit on the sublane axis, lanes (TL) on the 128-lane axis, so the
    centered difference is a sublane-axis slice, all elementwise math is
    lane-dense, and the row reduction is a sublane-axis sum.
    Returns (ovr_sum, union_sum), each of shape (1, TL).
    """
    nr = pred.shape[0]
    dy = img_h / (nr - 1) * 2.0                 # python float, trace-time const
    dy2 = jnp.float32(dy * dy)
    w_over_dy = jnp.float32(lane_width / dy)

    def half_width(x, clamp_dx):
        # Centered difference x[j+1] - x[j-1] along the row (sublane) axis.
        dx = (x[2:, :] - x[:-2, :]) * jnp.float32(img_w)        # (Nr-2, TL)
        if clamp_dx:
            dx = jnp.where(jnp.abs(dx) > jnp.float32(max_dx), 0.0, dx)
        w = w_over_dy * jnp.sqrt(dx * dx + dy2)                 # (Nr-2, TL)
        # Replicate padding of the edge rows, identical to the PyTorch
        # torch.cat([w[:, 0:1], w, w[:, -1:]], dim=1) (transposed here).
        return jnp.concatenate([w[:1, :], w, w[-1:, :]], axis=0)  # (Nr, TL)

    pw = half_width(pred, clamp_dx=False)
    tw = half_width(target, clamp_dx=True)

    # Interval algebra, simplified to cut VALU work (exact identity):
    #   ovr   = min(pred+pw, tgt+tw) - max(pred-pw, tgt-tw)
    #         = (pw + tw) - max(|pred - tgt|, |pw - tw|)
    #   union = (pw + tw) + max(|pred - tgt|, |pw - tw|)
    s = pw + tw
    m = jnp.maximum(jnp.abs(pred - target), jnp.abs(pw - tw))
    ovr = s - m
    union = s + m

    invalid = (target < 0.0) | (target >= 1.0)
    ovr = jnp.where(invalid, 0.0, ovr)
    union = jnp.where(invalid, 0.0, union)

    ovr_sum = jnp.sum(ovr, axis=0, keepdims=True)               # (1, TL)
    union_sum = jnp.sum(union, axis=0, keepdims=True)           # (1, TL)
    return ovr_sum, union_sum


def _fused_loss_kernel(pred_ref, target_ref, out_ref, *,
                       lane_width, img_h, img_w, max_dx):
    """Single-block kernel: writes sum_over_lanes(1 - iou) into a (1, 1) scalar."""
    pred = pred_ref[...].astype(jnp.float32)
    tgt = target_ref[...].astype(jnp.float32)
    ovr_sum, union_sum = _lane_iou_sums(
        pred, tgt, lane_width=lane_width, img_h=img_h, img_w=img_w, max_dx=max_dx)
    iou = ovr_sum / (union_sum + 1e-9)                          # (1, Nl)
    out_ref[...] = jnp.sum(1.0 - iou, axis=1, keepdims=True)    # (1, 1)


def _per_lane_iou_kernel(pred_ref, target_ref, iou_ref, *,
                         lane_width, img_h, img_w, max_dx):
    """Lane-tiled kernel: writes per-lane IoU as a lane-dense (1, TL) slab."""
    pred = pred_ref[...].astype(jnp.float32)
    tgt = target_ref[...].astype(jnp.float32)
    ovr_sum, union_sum = _lane_iou_sums(
        pred, tgt, lane_width=lane_width, img_h=img_h, img_w=img_w, max_dx=max_dx)
    iou_ref[...] = ovr_sum / (union_sum + 1e-9)                 # (1, TL)


def lane_iou_loss(pred, target, *, loss_weight=1.0, lane_width=7.5 / 768,
                  img_h=400, img_w=960, max_dx=10000.0, lanes_first=True,
                  max_block_bytes=1 << 20, small_bytes_threshold=256 * 1024):
    """Forward pass of LaneIoULoss: (1 - LaneIoU(pred, target)).mean() * w.

    By default `pred`/`target` follow the PyTorch convention (Nl, Nr).  For
    large, HBM-bound workloads, produce (Nr, Nl) upstream and pass
    `lanes_first=False` to skip the wrapper-side transpose pass.
    """
    assert pred.shape == target.shape, \
        "prediction and target must have the same shape!"
    if lanes_first:
        pred = pred.T
        target = target.T
    nr, nl = pred.shape
    assert nr >= 3, "LaneIoU needs at least 3 rows"

    params = dict(lane_width=lane_width, img_h=img_h, img_w=img_w, max_dx=max_dx)
    itemsize = pred.dtype.itemsize
    # VMEM guardrail: 2 inputs x 2 pipeline buffers x block_bytes must stay
    # under vmem_limit_bytes (remember v7x only has 64 MiB physical VMEM).
    compiler_params_serial = pltpu.CompilerParams(
        dimension_semantics=("arbitrary",), vmem_limit_bytes=32 * 1024 * 1024)
    compiler_params_parallel = pltpu.CompilerParams(
        dimension_semantics=("parallel",), vmem_limit_bytes=32 * 1024 * 1024)

    if nl * nr * itemsize <= small_bytes_threshold:
        # Overhead-dominated regime (typical CLRNet sizes): a single block
        # covering everything (no serial-loop grid overhead on v5e/v6e), with
        # the sum(1 - iou) epilogue fused in-kernel so only one (1, 1) scalar
        # goes back to HBM and no second XLA reduction is dispatched.
        total = pl.pallas_call(
            functools.partial(_fused_loss_kernel, **params),
            out_shape=jax.ShapeDtypeStruct((1, 1), jnp.float32),
            grid=(1,),
            in_specs=[pl.BlockSpec((nr, nl), lambda i: (0, 0)),
                      pl.BlockSpec((nr, nl), lambda i: (0, 0))],
            out_specs=pl.BlockSpec((1, 1), lambda i: (0, 0)),
            compiler_params=compiler_params_serial,
        )(pred, target)
        return total[0, 0] / nl * loss_weight

    # Large-Nl path: lane tiles (multiples of 128, ~max_block_bytes per input
    # block), one IoU per lane written as a lane-dense (1, Nl) slab, tiny mean
    # epilogue in plain JAX.  "parallel" lets v7x shard lane tiles across its
    # two TensorCores; on v5e/v6e the grid is just a pipelined serial loop.
    col_bytes = nr * itemsize
    lane_tile = max(128, ((max_block_bytes // col_bytes) // 128) * 128)
    lane_tile = min(lane_tile, _round_up(nl, 128))
    num_blocks = pl.cdiv(nl, lane_tile)   # ragged last block: stores are masked

    iou = pl.pallas_call(
        functools.partial(_per_lane_iou_kernel, **params),
        out_shape=jax.ShapeDtypeStruct((1, nl), jnp.float32),
        grid=(num_blocks,),
        in_specs=[pl.BlockSpec((nr, lane_tile), lambda i: (0, i)),
                  pl.BlockSpec((nr, lane_tile), lambda i: (0, i))],
        out_specs=pl.BlockSpec((1, lane_tile), lambda i: (0, i)),
        compiler_params=compiler_params_parallel,
    )(pred, target)
    return (1.0 - iou[0, :]).mean() * loss_weight


def _reference_loss(pred, target, loss_weight=1.0, lane_width=7.5 / 768,
                    img_h=400, img_w=960, max_dx=10000.0):
    """Pure-JAX reference mirroring the PyTorch LaneIoULoss module ((Nl, Nr))."""
    n_strips = pred.shape[1] - 1
    dy = img_h / n_strips * 2

    pred_dx = (pred[:, 2:] - pred[:, :-2]) * img_w
    pred_w = lane_width * jnp.sqrt(pred_dx ** 2 + dy ** 2) / dy
    pred_w = jnp.concatenate([pred_w[:, :1], pred_w, pred_w[:, -1:]], axis=1)

    target_dx = (target[:, 2:] - target[:, :-2]) * img_w
    target_dx = jnp.where(jnp.abs(target_dx) > max_dx, 0.0, target_dx)
    target_w = lane_width * jnp.sqrt(target_dx ** 2 + dy ** 2) / dy
    target_w = jnp.concatenate([target_w[:, :1], target_w, target_w[:, -1:]],
                               axis=1)

    px1, px2 = pred - pred_w, pred + pred_w
    tx1, tx2 = target - target_w, target + target_w
    ovr = jnp.minimum(px2, tx2) - jnp.maximum(px1, tx1)
    union = jnp.maximum(px2, tx2) - jnp.minimum(px1, tx1)
    invalid = (target < 0) | (target >= 1.0)
    ovr = jnp.where(invalid, 0.0, ovr)
    union = jnp.where(invalid, 0.0, union)
    iou = ovr.sum(-1) / (union.sum(-1) + 1e-9)
    return (1.0 - iou).mean() * loss_weight


if __name__ == "__main__":
    key = jax.random.PRNGKey(0)

    # --- small case (fused scalar-epilogue path) ----------------------------
    k1, k2, k3, k4 = jax.random.split(key, 4)
    Nl, Nr = 16, 72   # 16 lanes, 72 pre-defined rows (CLRNet/CLRerNet default)
    pred = jax.random.uniform(k1, (Nl, Nr), dtype=jnp.float32,
                              minval=0.0, maxval=1.0)
    target = jax.random.uniform(k2, (Nl, Nr), dtype=jnp.float32,
                                minval=-0.2, maxval=1.2)

    loss = jax.jit(lane_iou_loss)(pred, target)
    loss = jax.block_until_ready(loss)
    ref = _reference_loss(pred, target)
    assert jnp.allclose(loss, ref, atol=1e-5, rtol=1e-5), (loss, ref)

    # --- larger case (lane-tiled parallel path) ------------------------------
    Nl2 = 1200
    pred2 = jax.random.uniform(k3, (Nl2, Nr), dtype=jnp.float32,
                               minval=0.0, maxval=1.0)
    target2 = jax.random.uniform(k4, (Nl2, Nr), dtype=jnp.float32,
                                 minval=-0.2, maxval=1.2)
    loss2 = jax.jit(lane_iou_loss)(pred2, target2)
    loss2 = jax.block_until_ready(loss2)
    ref2 = _reference_loss(pred2, target2)
    assert jnp.allclose(loss2, ref2, atol=1e-5, rtol=1e-5), (loss2, ref2)

    print("KERNEL_OK")
</pallas_src>

<mosaic_0001>
module attributes {stable_mosaic.version = 11 : i64} {
  func.func @_fused_loss_kernel(%arg0: i32, %arg1: memref<72x16xf32, #tpu.memory_space<vmem>>, %arg2: memref<72x16xf32, #tpu.memory_space<vmem>>, %arg3: memref<1x1xf32, #tpu.memory_space<vmem>>) attributes {dimension_semantics = [#tpu.dimension_semantics<arbitrary>], iteration_bounds = array<i64: 1>, scalar_prefetch = 0 : i64, scratch_operands = 0 : i64, tpu.core_type = #tpu.core_type<tc>, window_params = [{pipeline_mode = #tpu.pipeline_mode<synchronous>, transform_indices = @transform_0, window_bounds = array<i64: 72, 16>}, {pipeline_mode = #tpu.pipeline_mode<synchronous>, transform_indices = @transform_1, window_bounds = array<i64: 72, 16>}, {pipeline_mode = #tpu.pipeline_mode<synchronous>, transform_indices = @transform_2, window_bounds = array<i64: 1, 1>}]} {
    %c0 = arith.constant 0 : index
    %c0_0 = arith.constant 0 : index
    %0 = vector.load %arg1[%c0, %c0_0] : memref<72x16xf32, #tpu.memory_space<vmem>>, vector<72x16xf32>
    %c0_1 = arith.constant 0 : index
    %c0_2 = arith.constant 0 : index
    %1 = vector.load %arg2[%c0_1, %c0_2] : memref<72x16xf32, #tpu.memory_space<vmem>>, vector<72x16xf32>
    %2 = vector.extract_strided_slice %0 {offsets = [2, 0], sizes = [70, 16], strides = [1, 1]} : vector<72x16xf32> to vector<70x16xf32>
    %3 = vector.extract_strided_slice %0 {offsets = [0, 0], sizes = [70, 16], strides = [1, 1]} : vector<72x16xf32> to vector<70x16xf32>
    %4 = arith.subf %2, %3 : vector<70x16xf32>
    %cst = arith.constant 9.600000e+02 : f32
    %5 = vector.broadcast %cst : f32 to vector<70x16xf32>
    %6 = arith.mulf %4, %5 : vector<70x16xf32>
    %7 = arith.mulf %6, %6 : vector<70x16xf32>
    %cst_3 = arith.constant 126.958939 : f32
    %8 = vector.broadcast %cst_3 : f32 to vector<70x16xf32>
    %9 = arith.addf %7, %8 : vector<70x16xf32>
    %10 = math.sqrt %9 : vector<70x16xf32>
    %cst_4 = arith.constant 8.66699207E-4 : f32
    %11 = vector.broadcast %cst_4 : f32 to vector<70x16xf32>
    %12 = arith.mulf %11, %10 : vector<70x16xf32>
    %13 = vector.extract_strided_slice %12 {offsets = [0, 0], sizes = [1, 16], strides = [1, 1]} : vector<70x16xf32> to vector<1x16xf32>
    %14 = vector.extract_strided_slice %12 {offsets = [69, 0], sizes = [1, 16], strides = [1, 1]} : vector<70x16xf32> to vector<1x16xf32>
    %15 = tpu.concatenate %13, %12, %14 in 0 : vector<1x16xf32>, vector<70x16xf32>, vector<1x16xf32> -> vector<72x16xf32>
    %16 = vector.extract_strided_slice %1 {offsets = [2, 0], sizes = [70, 16], strides = [1, 1]} : vector<72x16xf32> to vector<70x16xf32>
    %17 = vector.extract_strided_slice %1 {offsets = [0, 0], sizes = [70, 16], strides = [1, 1]} : vector<72x16xf32> to vector<70x16xf32>
    %18 = arith.subf %16, %17 : vector<70x16xf32>
    %cst_5 = arith.constant 9.600000e+02 : f32
    %19 = vector.broadcast %cst_5 : f32 to vector<70x16xf32>
    %20 = arith.mulf %18, %19 : vector<70x16xf32>
    %21 = math.absf %20 : vector<70x16xf32>
    %cst_6 = arith.constant 1.000000e+04 : f32
    %22 = vector.broadcast %cst_6 : f32 to vector<70x16xf32>
    %23 = arith.cmpf ogt, %21, %22 : vector<70x16xf32>
    %cst_7 = arith.constant 0.000000e+00 : f32
    %24 = vector.broadcast %cst_7 : f32 to vector<70x16xf32>
    %25 = arith.select %23, %24, %20 : vector<70x16xi1>, vector<70x16xf32>
    %26 = arith.mulf %25, %25 : vector<70x16xf32>
    %cst_8 = arith.constant 126.958939 : f32
    %27 = vector.broadcast %cst_8 : f32 to vector<70x16xf32>
    %28 = arith.addf %26, %27 : vector<70x16xf32>
    %29 = math.sqrt %28 : vector<70x16xf32>
    %cst_9 = arith.constant 8.66699207E-4 : f32
    %30 = vector.broadcast %cst_9 : f32 to vector<70x16xf32>
    %31 = arith.mulf %30, %29 : vector<70x16xf32>
    %32 = vector.extract_strided_slice %31 {offsets = [0, 0], sizes = [1, 16], strides = [1, 1]} : vector<70x16xf32> to vector<1x16xf32>
    %33 = vector.extract_strided_slice %31 {offsets = [69, 0], sizes = [1, 16], strides = [1, 1]} : vector<70x16xf32> to vector<1x16xf32>
    %34 = tpu.concatenate %32, %31, %33 in 0 : vector<1x16xf32>, vector<70x16xf32>, vector<1x16xf32> -> vector<72x16xf32>
    %35 = arith.addf %15, %34 : vector<72x16xf32>
    %36 = arith.subf %0, %1 : vector<72x16xf32>
    %37 = math.absf %36 : vector<72x16xf32>
    %38 = arith.subf %15, %34 : vector<72x16xf32>
    %39 = math.absf %38 : vector<72x16xf32>
    %40 = arith.maximumf %37, %39 : vector<72x16xf32>
    %41 = arith.subf %35, %40 : vector<72x16xf32>
    %42 = arith.addf %35, %40 : vector<72x16xf32>
    %cst_10 = arith.constant 0.000000e+00 : f32
    %43 = vector.broadcast %cst_10 : f32 to vector<72x16xf32>
    %44 = arith.cmpf olt, %1, %43 : vector<72x16xf32>
    %cst_11 = arith.constant 1.000000e+00 : f32
    %45 = vector.broadcast %cst_11 : f32 to vector<72x16xf32>
    %46 = arith.cmpf oge, %1, %45 : vector<72x16xf32>
    %47 = arith.ori %44, %46 : vector<72x16xi1>
    %cst_12 = arith.constant 0.000000e+00 : f32
    %48 = vector.broadcast %cst_12 : f32 to vector<72x16xf32>
    %49 = arith.select %47, %48, %41 : vector<72x16xi1>, vector<72x16xf32>
    %cst_13 = arith.constant 0.000000e+00 : f32
    %50 = vector.broadcast %cst_13 : f32 to vector<72x16xf32>
    %51 = arith.select %47, %50, %42 : vector<72x16xi1>, vector<72x16xf32>
    %cst_14 = arith.constant dense<0.000000e+00> : vector<16xf32>
    %52 = vector.multi_reduction <add>, %49, %cst_14 [0] : vector<72x16xf32> to vector<16xf32>
    %53 = vector.shape_cast %52 : vector<16xf32> to vector<1x16xf32>
    %cst_15 = arith.constant dense<0.000000e+00> : vector<16xf32>
    %54 = vector.multi_reduction <add>, %51, %cst_15 [0] : vector<72x16xf32> to vector<16xf32>
    %55 = vector.shape_cast %54 : vector<16xf32> to vector<1x16xf32>
    %cst_16 = arith.constant 9.99999971E-10 : f32
    %56 = vector.broadcast %cst_16 : f32 to vector<1x16xf32>
    %57 = arith.addf %55, %56 : vector<1x16xf32>
    %58 = arith.divf %53, %57 : vector<1x16xf32>
    %cst_17 = arith.constant 1.000000e+00 : f32
    %59 = vector.broadcast %cst_17 : f32 to vector<1x16xf32>
    %60 = arith.subf %59, %58 : vector<1x16xf32>
    %cst_18 = arith.constant dense<0.000000e+00> : vector<1xf32>
    %61 = vector.multi_reduction <add>, %60, %cst_18 [1] : vector<1x16xf32> to vector<1xf32>
    %62 = vector.shape_cast %61 : vector<1xf32> to vector<1x1xf32>
    %c0_19 = arith.constant 0 : index
    %c0_20 = arith.constant 0 : index
    %63 = vector.load %arg3[%c0_19, %c0_20] : memref<1x1xf32, #tpu.memory_space<vmem>>, vector<1x1xf32>
    tpu.vector_store %arg3[%c0_19, %c0_20], %62 {strides = array<i32>} : memref<1x1xf32, #tpu.memory_space<vmem>>, vector<1x1xf32>,
    return
  }
  func.func @transform_0(%arg0: i32) -> (i32, i32) {
    %c0_i32 = arith.constant 0 : i32
    %c0_i32_0 = arith.constant 0 : i32
    %c0_i32_1 = arith.constant 0 : i32
    return %c0_i32, %c0_i32_0 : i32, i32
  }
  func.func @transform_1(%arg0: i32) -> (i32, i32) {
    %c0_i32 = arith.constant 0 : i32
    %c0_i32_0 = arith.constant 0 : i32
    %c0_i32_1 = arith.constant 0 : i32
    return %c0_i32, %c0_i32_0 : i32, i32
  }
  func.func @transform_2(%arg0: i32) -> (i32, i32) {
    %c0_i32 = arith.constant 0 : i32
    %c0_i32_0 = arith.constant 0 : i32
    %c0_i32_1 = arith.constant 0 : i32
    return %c0_i32, %c0_i32_0 : i32, i32
  }
}

</mosaic_0001>

<llo_original>
// kernel: lane_iou_loss.1
$region0: #{lane_iou_loss.1}
  #allocation0 [shape = 'u32[]', space=smem, size = 0x4, offset = 0x4, fixed_abs, tag = 'smem constant byte address 0x4 - core index']
  #allocation1 [shape = 'u32[144,128]{1,0:T(1,128)}', space=vmem, size = 0x12000, scoped, tag = 'internal scratch']
  %s0 = inlined_call_operand.vmem [shape: f32[72,16], index: 0, kind: input, shape index: {}]
  %s1 = inlined_call_operand.vmem [shape: f32[72,16], index: 1, kind: input, shape index: {}]
  %s2 = inlined_call_operand.hbm [shape: f32[1,1], index: 2, kind: output, shape index: {}]
  %s3 = sld [smem:[#allocation0]]
  $region18: #{lane_iou_loss.1} parent=0
    _
  %s5 = ssub.s32 1, %s3
  %s6 = scalar_select 0, %s5, %s3
  $region1: #{lane_iou_loss.1} parent=0
    #allocation2 [shape = 'u8[512]{0}', space=vmem, size = 0x400, scoped, tag = 'output window, operand 0, single buffered']
    #allocation3 [shape = 's32[1]{0}', space=sflag, size = 0x4, scoped, tag = 'scoped memory for lane_iou_loss.1']
    %7 = vsyncpa [#allocation3], 0
    // Predicated region
    $region2: #{lane_iou_loss.1} parent=1 // pred_check
      _
    $region3: #{lane_iou_loss.1} parent=1 // pred_check_branch
      %9 = sbr.rel (0) target = $region5
    $region4: #{lane_iou_loss.1} parent=1 // pred_region
      _
    $region5: #{lane_iou_loss.1} parent=1 // pred_fallthru
      _
    // Predicated region
    $region6: #{lane_iou_loss.1} parent=1 // pred_check
      _
    $region7: #{lane_iou_loss.1} parent=1 // pred_check_branch
      %11 = sbr.rel (0) target = $region9
    $region8: #{lane_iou_loss.1} parent=1 // pred_region
      _
    $region9: #{lane_iou_loss.1} parent=1 // pred_fallthru
      _
    %v12 = vld [vmem:[%s0] sm:$0xff]
    %v13 = vld [vmem:[%s0 + $0x8] sm:$0xff]
    %v14 = vld [vmem:[%s0 + $0x10] sm:$0xff]
    %v15 = vld [vmem:[%s0 + $0x18] sm:$0xff]
    %v16 = vld [vmem:[%s0 + $0x20] sm:$0xff]
    %v17 = vld [vmem:[%s0 + $0x28] sm:$0xff]
    %v18 = vld [vmem:[%s0 + $0x30] sm:$0xff]
    %v19 = vld [vmem:[%s0 + $0x38] sm:$0xff]
    %v20 = vld [vmem:[%s0 + $0x40] sm:$0xff]
    %v21 = vld [vmem:[%s1] sm:$0xff]
    %v22 = vld [vmem:[%s1 + $0x8] sm:$0xff]
    %v23 = vld [vmem:[%s1 + $0x10] sm:$0xff]
    %v24 = vld [vmem:[%s1 + $0x18] sm:$0xff]
    %v25 = vld [vmem:[%s1 + $0x20] sm:$0xff]
    %v26 = vld [vmem:[%s1 + $0x28] sm:$0xff]
    %v27 = vld [vmem:[%s1 + $0x30] sm:$0xff]
    %v28 = vld [vmem:[%s1 + $0x38] sm:$0xff]
    %v29 = vld [vmem:[%s1 + $0x40] sm:$0xff]
    %vm39 = vcmask 1041408
    %v40 = vrot.slane %v12, 6
    %v41 = vrot.slane %v13, 6
    %v42 = vsel %vm39, %v40, %v41
    %v43 = vrot.slane %v14, 6
    %v44 = vsel %vm39, %v41, %v43
    %v45 = vrot.slane %v15, 6
    %v46 = vsel %vm39, %v43, %v45
    %v47 = vrot.slane %v16, 6
    %v48 = vsel %vm39, %v45, %v47
    %v49 = vrot.slane %v17, 6
    %v50 = vsel %vm39, %v47, %v49
    %v51 = vrot.slane %v18, 6
    %v52 = vsel %vm39, %v49, %v51
    %v53 = vrot.slane %v19, 6
    %v54 = vsel %vm39, %v51, %v53
    %v55 = vrot.slane %v20, 6
    %v56 = vsel %vm39, %v53, %v55
    %v66 = vsub.f32 %v12, %v40
    %v67 = vsub.f32 %v13, %v42
    %v68 = vsub.f32 %v14, %v44
    %v69 = vsub.f32 %v15, %v46
    %v70 = vsub.f32 %v16, %v48
    %v71 = vsub.f32 %v17, %v50
    %v72 = vsub.f32 %v18, %v52
    %v73 = vsub.f32 %v19, %v54
    %v74 = vsub.f32 %v20, %v56
    %v75 = vmul.f32 %v66, 960.0
    %v76 = vmul.f32 %v67, 960.0
    %v77 = vmul.f32 %v68, 960.0
    %v78 = vmul.f32 %v69, 960.0
    %v79 = vmul.f32 %v70, 960.0
    %v80 = vmul.f32 %v71, 960.0
    %v81 = vmul.f32 %v72, 960.0
    %v82 = vmul.f32 %v73, 960.0
    %v83 = vmul.f32 %v74, 960.0
    %v84 = vmul.f32 %v75, %v75
    %v85 = vmul.f32 %v76, %v76
    %v86 = vmul.f32 %v77, %v77
    %v87 = vmul.f32 %v78, %v78
    %v88 = vmul.f32 %v79, %v79
    %v89 = vmul.f32 %v80, %v80
    %v90 = vmul.f32 %v81, %v81
    %v91 = vmul.f32 %v82, %v82
    %v92 = vmul.f32 %v83, %v83
    %v93 = vadd.f32 %v84, 126.95894
    %v94 = vadd.f32 %v85, 126.95894
    %v95 = vadd.f32 %v86, 126.95894
    %v96 = vadd.f32 %v87, 126.95894
    %v97 = vadd.f32 %v88, 126.95894
    %v98 = vadd.f32 %v89, 126.95894
    %v99 = vadd.f32 %v90, 126.95894
    %v100 = vadd.f32 %v91, 126.95894
    %v101 = vadd.f32 %v92, 126.95894
    %v102 = vrsqrt.pop %v93
    %v103 = vmul.f32 %v93, %v102
    %vm104 = vcmp.eq.f32.partialorder %v93, inf
    %v105 = vsel %vm104, %v93, %v103
    %vm106 = vcmp.eq.f32.partialorder %v93, 0.0
    %v107 = vand.u32 %v93, 2147483648
    %v108 = vsel %vm106, %v107, %v105
    %v109 = vrsqrt.pop %v94
    %v110 = vmul.f32 %v94, %v109
    %vm111 = vcmp.eq.f32.partialorder %v94, inf
    %v112 = vsel %vm111, %v94, %v110
    %vm113 = vcmp.eq.f32.partialorder %v94, 0.0
    %v114 = vand.u32 %v94, 2147483648
    %v115 = vsel %vm113, %v114, %v112
    %v116 = vrsqrt.pop %v95
    %v117 = vmul.f32 %v95, %v116
    %vm118 = vcmp.eq.f32.partialorder %v95, inf
    %v119 = vsel %vm118, %v95, %v117
    %vm120 = vcmp.eq.f32.partialorder %v95, 0.0
    %v121 = vand.u32 %v95, 2147483648
    %v122 = vsel %vm120, %v121, %v119
    %v123 = vrsqrt.pop %v96
    %v124 = vmul.f32 %v96, %v123
    %vm125 = vcmp.eq.f32.partialorder %v96, inf
    %v126 = vsel %vm125, %v96, %v124
    %vm127 = vcmp.eq.f32.partialorder %v96, 0.0
    %v128 = vand.u32 %v96, 2147483648
    %v129 = vsel %vm127, %v128, %v126
    %v130 = vrsqrt.pop %v97
    %v131 = vmul.f32 %v97, %v130
    %vm132 = vcmp.eq.f32.partialorder %v97, inf
    %v133 = vsel %vm132, %v97, %v131
    %vm134 = vcmp.eq.f32.partialorder %v97, 0.0
    %v135 = vand.u32 %v97, 2147483648
    %v136 = vsel %vm134, %v135, %v133
    %v137 = vrsqrt.pop %v98
    %v138 = vmul.f32 %v98, %v137
    %vm139 = vcmp.eq.f32.partialorder %v98, inf
    %v140 = vsel %vm139, %v98, %v138
    %vm141 = vcmp.eq.f32.partialorder %v98, 0.0
    %v142 = vand.u32 %v98, 2147483648
    %v143 = vsel %vm141, %v142, %v140
    %v144 = vrsqrt.pop %v99
    %v145 = vmul.f32 %v99, %v144
    %vm146 = vcmp.eq.f32.partialorder %v99, inf
    %v147 = vsel %vm146, %v99, %v145
    %vm148 = vcmp.eq.f32.partialorder %v99, 0.0
    %v149 = vand.u32 %v99, 2147483648
    %v150 = vsel %vm148, %v149, %v147
    %v151 = vrsqrt.pop %v100
    %v152 = vmul.f32 %v100, %v151
    %vm153 = vcmp.eq.f32.partialorder %v100, inf
    %v154 = vsel %vm153, %v100, %v152
    %vm155 = vcmp.eq.f32.partialorder %v100, 0.0
    %v156 = vand.u32 %v100, 2147483648
    %v157 = vsel %vm155, %v156, %v154
    %v158 = vrsqrt.pop %v101
    %v159 = vmul.f32 %v101, %v158
    %vm160 = vcmp.eq.f32.partialorder %v101, inf
    %v161 = vsel %vm160, %v101, %v159
    %vm162 = vcmp.eq.f32.partialorder %v101, 0.0
    %v163 = vand.u32 %v101, 2147483648
    %v164 = vsel %vm162, %v163, %v161
    %v165 = vmul.f32 %v108, 0.0008666992
    %v166 = vmul.f32 %v115, 0.0008666992
    %v167 = vmul.f32 %v122, 0.0008666992
    %v168 = vmul.f32 %v129, 0.0008666992
    %v169 = vmul.f32 %v136, 0.0008666992
    %v170 = vmul.f32 %v143, 0.0008666992
    %v171 = vmul.f32 %v150, 0.0008666992
    %v172 = vmul.f32 %v157, 0.0008666992
    %v173 = vmul.f32 %v164, 0.0008666992
    %v175 = vrot.slane %v165, 2
    %vm185 = vcmask 1046528
    %v186 = vrot.slane %v165, 1
    %v187 = vrot.slane %v166, 1
    %v188 = vsel %vm185, %v186, %v187
    %v189 = vrot.slane %v167, 1
    %v190 = vsel %vm185, %v187, %v189
    %v191 = vrot.slane %v168, 1
    %v192 = vsel %vm185, %v189, %v191
    %v193 = vrot.slane %v169, 1
    %v194 = vsel %vm185, %v191, %v193
    %v195 = vrot.slane %v170, 1
    %v196 = vsel %vm185, %v193, %v195
    %v197 = vrot.slane %v171, 1
    %v198 = vsel %vm185, %v195, %v197
    %v199 = vrot.slane %v172, 1
    %v200 = vsel %vm185, %v197, %v199
    %v201 = vrot.slane %v173, 1
    %v202 = vsel %vm185, %v199, %v201
    %vm212 = vcmask 1040384
    %v213 = vsel %vm212, %v175, %v188
    %v214 = vsel %vm185, %v201, %v173
    %v224 = vrot.slane %v21, 6
    %v225 = vrot.slane %v22, 6
    %v226 = vsel %vm39, %v224, %v225
    %v227 = vrot.slane %v23, 6
    %v228 = vsel %vm39, %v225, %v227
    %v229 = vrot.slane %v24, 6
    %v230 = vsel %vm39, %v227, %v229
    %v231 = vrot.slane %v25, 6
    %v232 = vsel %vm39, %v229, %v231
    %v233 = vrot.slane %v26, 6
    %v234 = vsel %vm39, %v231, %v233
    %v235 = vrot.slane %v27, 6
    %v236 = vsel %vm39, %v233, %v235
    %v237 = vrot.slane %v28, 6
    %v238 = vsel %vm39, %v235, %v237
    %v239 = vrot.slane %v29, 6
    %v240 = vsel %vm39, %v237, %v239
    %v250 = vsub.f32 %v21, %v224
    %v251 = vsub.f32 %v22, %v226
    %v252 = vsub.f32 %v23, %v228
    %v253 = vsub.f32 %v24, %v230
    %v254 = vsub.f32 %v25, %v232
    %v255 = vsub.f32 %v26, %v234
    %v256 = vsub.f32 %v27, %v236
    %v257 = vsub.f32 %v28, %v238
    %v258 = vsub.f32 %v29, %v240
    %v259 = vmul.f32 %v250, 960.0
    %v260 = vmul.f32 %v251, 960.0
    %v261 = vmul.f32 %v252, 960.0
    %v262 = vmul.f32 %v253, 960.0
    %v263 = vmul.f32 %v254, 960.0
    %v264 = vmul.f32 %v255, 960.0
    %v265 = vmul.f32 %v256, 960.0
    %v266 = vmul.f32 %v257, 960.0
    %v267 = vmul.f32 %v258, 960.0
    %v268 = vand.u32 2147483647, %v259
    %v269 = vand.u32 2147483647, %v260
    %v270 = vand.u32 2147483647, %v261
    %v271 = vand.u32 2147483647, %v262
    %v272 = vand.u32 2147483647, %v263
    %v273 = vand.u32 2147483647, %v264
    %v274 = vand.u32 2147483647, %v265
    %v275 = vand.u32 2147483647, %v266
    %v276 = vand.u32 2147483647, %v267
    %vm277 = vcmp.gt.f32.partialorder %v268, 10000.0
    %vm278 = vcmp.gt.f32.partialorder %v269, 10000.0
    %vm279 = vcmp.gt.f32.partialorder %v270, 10000.0
    %vm280 = vcmp.gt.f32.partialorder %v271, 10000.0
    %vm281 = vcmp.gt.f32.partialorder %v272, 10000.0
    %vm282 = vcmp.gt.f32.partialorder %v273, 10000.0
    %vm283 = vcmp.gt.f32.partialorder %v274, 10000.0
    %vm284 = vcmp.gt.f32.partialorder %v275, 10000.0
    %vm285 = vcmp.gt.f32.partialorder %v276, 10000.0
    %v286 = vsel %vm277, 0.0, %v259
    %v287 = vsel %vm278, 0.0, %v260
    %v288 = vsel %vm279, 0.0, %v261
    %v289 = vsel %vm280, 0.0, %v262
    %v290 = vsel %vm281, 0.0, %v263
    %v291 = vsel %vm282, 0.0, %v264
    %v292 = vsel %vm283, 0.0, %v265
    %v293 = vsel %vm284, 0.0, %v266
    %v294 = vsel %vm285, 0.0, %v267
    %v295 = vmul.f32 %v286, %v286
    %v296 = vmul.f32 %v287, %v287
    %v297 = vmul.f32 %v288, %v288
    %v298 = vmul.f32 %v289, %v289
    %v299 = vmul.f32 %v290, %v290
    %v300 = vmul.f32 %v291, %v291
    %v301 = vmul.f32 %v292, %v292
    %v302 = vmul.f32 %v293, %v293
    %v303 = vmul.f32 %v294, %v294
    %v304 = vadd.f32 %v295, 126.95894
    %v305 = vadd.f32 %v296, 126.95894
    %v306 = vadd.f32 %v297, 126.95894
    %v307 = vadd.f32 %v298, 126.95894
    %v308 = vadd.f32 %v299, 126.95894
    %v309 = vadd.f32 %v300, 126.95894
    %v310 = vadd.f32 %v301, 126.95894
    %v311 = vadd.f32 %v302, 126.95894
    %v312 = vadd.f32 %v303, 126.95894
    %v313 = vrsqrt.pop %v304
    %v314 = vmul.f32 %v304, %v313
    %vm315 = vcmp.eq.f32.partialorder %v304, inf
    %v316 = vsel %vm315, %v304, %v314
    %vm317 = vcmp.eq.f32.partialorder %v304, 0.0
    %v318 = vand.u32 %v304, 2147483648
    %v319 = vsel %vm317, %v318, %v316
    %v320 = vrsqrt.pop %v305
    %v321 = vmul.f32 %v305, %v320
    %vm322 = vcmp.eq.f32.partialorder %v305, inf
    %v323 = vsel %vm322, %v305, %v321
    %vm324 = vcmp.eq.f32.partialorder %v305, 0.0
    %v325 = vand.u32 %v305, 2147483648
    %v326 = vsel %vm324, %v325, %v323
    %v327 = vrsqrt.pop %v306
    %v328 = vmul.f32 %v306, %v327
    %vm329 = vcmp.eq.f32.partialorder %v306, inf
    %v330 = vsel %vm329, %v306, %v328
    %vm331 = vcmp.eq.f32.partialorder %v306, 0.0
    %v332 = vand.u32 %v306, 2147483648
    %v333 = vsel %vm331, %v332, %v330
    %v334 = vrsqrt.pop %v307
    %v335 = vmul.f32 %v307, %v334
    %vm336 = vcmp.eq.f32.partialorder %v307, inf
    %v337 = vsel %vm336, %v307, %v335
    %vm338 = vcmp.eq.f32.partialorder %v307, 0.0
    %v339 = vand.u32 %v307, 2147483648
    %v340 = vsel %vm338, %v339, %v337
    %v341 = vrsqrt.pop %v308
    %v342 = vmul.f32 %v308, %v341
    %vm343 = vcmp.eq.f32.partialorder %v308, inf
    %v344 = vsel %vm343, %v308, %v342
    %vm345 = vcmp.eq.f32.partialorder %v308, 0.0
    %v346 = vand.u32 %v308, 2147483648
    %v347 = vsel %vm345, %v346, %v344
    %v348 = vrsqrt.pop %v309
    %v349 = vmul.f32 %v309, %v348
    %vm350 = vcmp.eq.f32.partialorder %v309, inf
    %v351 = vsel %vm350, %v309, %v349
    %vm352 = vcmp.eq.f32.partialorder %v309, 0.0
    %v353 = vand.u32 %v309, 2147483648
    %v354 = vsel %vm352, %v353, %v351
    %v355 = vrsqrt.pop %v310
    %v356 = vmul.f32 %v310, %v355
    %vm357 = vcmp.eq.f32.partialorder %v310, inf
    %v358 = vsel %vm357, %v310, %v356
    %vm359 = vcmp.eq.f32.partialorder %v310, 0.0
    %v360 = vand.u32 %v310, 2147483648
    %v361 = vsel %vm359, %v360, %v358
    %v362 = vrsqrt.pop %v311
    %v363 = vmul.f32 %v311, %v362
    %vm364 = vcmp.eq.f32.partialorder %v311, inf
    %v365 = vsel %vm364, %v311, %v363
    %vm366 = vcmp.eq.f32.partialorder %v311, 0.0
    %v367 = vand.u32 %v311, 2147483648
    %v368 = vsel %vm366, %v367, %v365
    %v369 = vrsqrt.pop %v312
    %v370 = vmul.f32 %v312, %v369
    %vm371 = vcmp.eq.f32.partialorder %v312, inf
    %v372 = vsel %vm371, %v312, %v370
    %vm373 = vcmp.eq.f32.partialorder %v312, 0.0
    %v374 = vand.u32 %v312, 2147483648
    %v375 = vsel %vm373, %v374, %v372
    %v376 = vmul.f32 %v319, 0.0008666992
    %v377 = vmul.f32 %v326, 0.0008666992
    %v378 = vmul.f32 %v333, 0.0008666992
    %v379 = vmul.f32 %v340, 0.0008666992
    %v380 = vmul.f32 %v347, 0.0008666992
    %v381 = vmul.f32 %v354, 0.0008666992
    %v382 = vmul.f32 %v361, 0.0008666992
    %v383 = vmul.f32 %v368, 0.0008666992
    %v384 = vmul.f32 %v375, 0.0008666992
    %v386 = vrot.slane %v376, 2
    %v396 = vrot.slane %v376, 1
    %v397 = vrot.slane %v377, 1
    %v398 = vsel %vm185, %v396, %v397
    %v399 = vrot.slane %v378, 1
    %v400 = vsel %vm185, %v397, %v399
    %v401 = vrot.slane %v379, 1
    %v402 = vsel %vm185, %v399, %v401
    %v403 = vrot.slane %v380, 1
    %v404 = vsel %vm185, %v401, %v403
    %v405 = vrot.slane %v381, 1
    %v406 = vsel %vm185, %v403, %v405
    %v407 = vrot.slane %v382, 1
    %v408 = vsel %vm185, %v405, %v407
    %v409 = vrot.slane %v383, 1
    %v410 = vsel %vm185, %v407, %v409
    %v411 = vrot.slane %v384, 1
    %v412 = vsel %vm185, %v409, %v411
    %v422 = vsel %vm212, %v386, %v398
    %v423 = vsel %vm185, %v411, %v384
    %v424 = vadd.f32 %v213, %v422
    %v425 = vadd.f32 %v190, %v400
    %v426 = vadd.f32 %v192, %v402
    %v427 = vadd.f32 %v194, %v404
    %v428 = vadd.f32 %v196, %v406
    %v429 = vadd.f32 %v198, %v408
    %v430 = vadd.f32 %v200, %v410
    %v431 = vadd.f32 %v202, %v412
    %v432 = vadd.f32 %v214, %v423
    %v433 = vsub.f32 %v12, %v21
    %v434 = vsub.f32 %v13, %v22
    %v435 = vsub.f32 %v14, %v23
    %v436 = vsub.f32 %v15, %v24
    %v437 = vsub.f32 %v16, %v25
    %v438 = vsub.f32 %v17, %v26
    %v439 = vsub.f32 %v18, %v27
    %v440 = vsub.f32 %v19, %v28
    %v441 = vsub.f32 %v20, %v29
    %v442 = vand.u32 2147483647, %v433
    %v443 = vand.u32 2147483647, %v434
    %v444 = vand.u32 2147483647, %v435
    %v445 = vand.u32 2147483647, %v436
    %v446 = vand.u32 2147483647, %v437
    %v447 = vand.u32 2147483647, %v438
    %v448 = vand.u32 2147483647, %v439
    %v449 = vand.u32 2147483647, %v440
    %v450 = vand.u32 2147483647, %v441
    %v451 = vsub.f32 %v213, %v422
    %v452 = vsub.f32 %v190, %v400
    %v453 = vsub.f32 %v192, %v402
    %v454 = vsub.f32 %v194, %v404
    %v455 = vsub.f32 %v196, %v406
    %v456 = vsub.f32 %v198, %v408
    %v457 = vsub.f32 %v200, %v410
    %v458 = vsub.f32 %v202, %v412
    %v459 = vsub.f32 %v214, %v423
    %v460 = vand.u32 2147483647, %v451
    %v461 = vand.u32 2147483647, %v452
    %v462 = vand.u32 2147483647, %v453
    %v463 = vand.u32 2147483647, %v454
    %v464 = vand.u32 2147483647, %v455
    %v465 = vand.u32 2147483647, %v456
    %v466 = vand.u32 2147483647, %v457
    %v467 = vand.u32 2147483647, %v458
    %v468 = vand.u32 2147483647, %v459
    %v469 = vmax.f32 %v442, %v460
    %v470 = vmax.f32 %v443, %v461
    %v471 = vmax.f32 %v444, %v462
    %v472 = vmax.f32 %v445, %v463
    %v473 = vmax.f32 %v446, %v464
    %v474 = vmax.f32 %v447, %v465
    %v475 = vmax.f32 %v448, %v466
    %v476 = vmax.f32 %v449, %v467
    %v477 = vmax.f32 %v450, %v468
    %v478 = vsub.f32 %v424, %v469
    %v479 = vsub.f32 %v425, %v470
    %v480 = vsub.f32 %v426, %v471
    %v481 = vsub.f32 %v427, %v472
    %v482 = vsub.f32 %v428, %v473
    %v483 = vsub.f32 %v429, %v474
    %v484 = vsub.f32 %v430, %v475
    %v485 = vsub.f32 %v431, %v476
    %v486 = vsub.f32 %v432, %v477
    %v487 = vadd.f32 %v424, %v469
    %v488 = vadd.f32 %v425, %v470
    %v489 = vadd.f32 %v426, %v471
    %v490 = vadd.f32 %v427, %v472
    %v491 = vadd.f32 %v428, %v473
    %v492 = vadd.f32 %v429, %v474
    %v493 = vadd.f32 %v430, %v475
    %v494 = vadd.f32 %v431, %v476
    %v495 = vadd.f32 %v432, %v477
    %vm496 = vcmp.lt.f32.partialorder %v21, 0.0
    %vm497 = vcmp.lt.f32.partialorder %v22, 0.0
    %vm498 = vcmp.lt.f32.partialorder %v23, 0.0
    %vm499 = vcmp.lt.f32.partialorder %v24, 0.0
    %vm500 = vcmp.lt.f32.partialorder %v25, 0.0
    %vm501 = vcmp.lt.f32.partialorder %v26, 0.0
    %vm502 = vcmp.lt.f32.partialorder %v27, 0.0
    %vm503 = vcmp.lt.f32.partialorder %v28, 0.0
    %vm504 = vcmp.lt.f32.partialorder %v29, 0.0
    %vm505 = vcmp.ge.f32.partialorder %v21, 1.0
    %vm506 = vcmp.ge.f32.partialorder %v22, 1.0
    %vm507 = vcmp.ge.f32.partialorder %v23, 1.0
    %vm508 = vcmp.ge.f32.partialorder %v24, 1.0
    %vm509 = vcmp.ge.f32.partialorder %v25, 1.0
    %vm510 = vcmp.ge.f32.partialorder %v26, 1.0
    %vm511 = vcmp.ge.f32.partialorder %v27, 1.0
    %vm512 = vcmp.ge.f32.partialorder %v28, 1.0
    %vm513 = vcmp.ge.f32.partialorder %v29, 1.0
    %vm514 = vmor %vm496, %vm505
    %vm515 = vmor %vm497, %vm506
    %vm516 = vmor %vm498, %vm507
    %vm517 = vmor %vm499, %vm508
    %vm518 = vmor %vm500, %vm509
    %vm519 = vmor %vm501, %vm510
    %vm520 = vmor %vm502, %vm511
    %vm521 = vmor %vm503, %vm512
    %vm522 = vmor %vm504, %vm513
    %v523 = vsel %vm514, 0.0, %v478
    %v524 = vsel %vm515, 0.0, %v479
    %v525 = vsel %vm516, 0.0, %v480
    %v526 = vsel %vm517, 0.0, %v481
    %v527 = vsel %vm518, 0.0, %v482
    %v528 = vsel %vm519, 0.0, %v483
    %v529 = vsel %vm520, 0.0, %v484
    %v530 = vsel %vm521, 0.0, %v485
    %v531 = vsel %vm522, 0.0, %v486
    %v532 = vsel %vm514, 0.0, %v487
    %v533 = vsel %vm515, 0.0, %v488
    %v534 = vsel %vm516, 0.0, %v489
    %v535 = vsel %vm517, 0.0, %v490
    %v536 = vsel %vm518, 0.0, %v491
    %v537 = vsel %vm519, 0.0, %v492
    %v538 = vsel %vm520, 0.0, %v493
    %v539 = vsel %vm521, 0.0, %v494
    %v540 = vsel %vm522, 0.0, %v495
    %vm541 = vcmask 130048
    %v542 = vsel %vm541, %v523, 0.0
    %v543 = vsel %vm541, %v524, 0.0
    %v544 = vadd.f32 %v542, %v543
    %v545 = vsel %vm541, %v525, 0.0
    %v546 = vadd.f32 %v544, %v545
    %v547 = vsel %vm541, %v526, 0.0
    %v548 = vadd.f32 %v546, %v547
    %v549 = vsel %vm541, %v527, 0.0
    %v550 = vadd.f32 %v548, %v549
    %v551 = vsel %vm541, %v528, 0.0
    %v552 = vadd.f32 %v550, %v551
    %v553 = vsel %vm541, %v529, 0.0
    %v554 = vadd.f32 %v552, %v553
    %v555 = vsel %vm541, %v530, 0.0
    %v556 = vadd.f32 %v554, %v555
    %v557 = vsel %vm541, %v531, 0.0
    %v558 = vadd.f32 %v556, %v557
    %v559 = vrot.slane %v558, 4
    %v560 = vadd.f32 %v558, %v559
    %v561 = vrot.slane %v560, 2
    %v562 = vadd.f32 %v560, %v561
    %v563 = vrot.slane %v562, 1
    %v564 = vadd.f32 %v562, %v563
    %v565 = vsel %vm541, %v532, 0.0
    %v566 = vsel %vm541, %v533, 0.0
    %v567 = vadd.f32 %v565, %v566
    %v568 = vsel %vm541, %v534, 0.0
    %v569 = vadd.f32 %v567, %v568
    %v570 = vsel %vm541, %v535, 0.0
    %v571 = vadd.f32 %v569, %v570
    %v572 = vsel %vm541, %v536, 0.0
    %v573 = vadd.f32 %v571, %v572
    %v574 = vsel %vm541, %v537, 0.0
    %v575 = vadd.f32 %v573, %v574
    %v576 = vsel %vm541, %v538, 0.0
    %v577 = vadd.f32 %v575, %v576
    %v578 = vsel %vm541, %v539, 0.0
    %v579 = vadd.f32 %v577, %v578
    %v580 = vsel %vm541, %v540, 0.0
    %v581 = vadd.f32 %v579, %v580
    %v582 = vrot.slane %v581, 4
    %v583 = vadd.f32 %v581, %v582
    %v584 = vrot.slane %v583, 2
    %v585 = vadd.f32 %v583, %v584
    %v586 = vrot.slane %v585, 1
    %v587 = vadd.f32 %v585, %v586
    %v588 = vadd.f32 %v587, 1e-09
    %v589 = vrcp.pop %v588
    %v590 = vmul.f32 %v564, %v589
    %v591 = vsub.f32 1.0, %v590
    %v592 = vsel %vm541, %v591, 0.0
    %593 = vadd.xlane.f32.xlu0 %v592
    %v594 = vpop.xlane.xlu0 %593
    %vm595 = vcmask 0
    %596 = vst.msk [vmem:[#allocation2] sm:$0x1] %vm595, %v594
    // Predicated region
    $region10: #{lane_iou_loss.1} parent=1 // pred_check
      _
    $region11: #{lane_iou_loss.1} parent=1 // pred_check_branch
      %598 = sbr.rel (0) target = $region13
    $region12: #{lane_iou_loss.1} parent=1 // pred_region
      %s600 = ssub.s32 16, 16
      %601 = vsyncadd [#allocation3], %s600
      %s603 = sshll.u32 [#allocation2], 4
      %s604 = int_to_ptr.vmem [resolvable:$true] %s603
      %606 = dma.vmem_to_hbm [thread:$0]  %s604, 16, %s2, [#allocation3]
    $region13: #{lane_iou_loss.1} parent=1 // pred_fallthru
      _
    // Predicated region
    $region14: #{lane_iou_loss.1} parent=1 // pred_check
      _
    $region15: #{lane_iou_loss.1} parent=1 // pred_check_branch
      %608 = sbr.rel (0) target = $region17
    $region16: #{lane_iou_loss.1} parent=1 // pred_region
      %609 = dma.done [#allocation3], 16
    $region17: #{lane_iou_loss.1} parent=1 // pred_fallthru
      _
    %610 = vsyncpa [#allocation3], 1

</llo_original>
